<compile_context>
chip_gen: v6e
topology: v6e:2x2x1
jax: 0.10.0
libtpu: 0.0.40
codegen_flags: <defaults>
</compile_context>

<pallas_src>
import math

import jax
import jax.numpy as jnp
from jax.experimental import pallas as pl
from jax.experimental.pallas import tpu as pltpu


# Deterministic "parameters" (the module's __init__ dict). Chosen so the
# non-trivial branch (wc != 0) is exercised. They are fixed per module
# instance, so we bake them as compile-time constants (one Mosaic compile per
# distinct parameter set).
GAUSSIAN_PARAMS = {"n": 0, "c": 0.2, "s": 0.05, "r": 0.1}

_LANE = 128
_SUBLANE = 8
# Dtype-aware block target: ~8 MiB per stream per block. Per-grid-step
# pipeline overhead (~0.35 us) is <10% even at v7x's 3.2 TB/s, while
# 2 streams x 2 buffers x 8 MiB = 32 MiB VMEM leaves headroom under v7x's
# 64 MiB physical VMEM.
_TARGET_BLOCK_BYTES = 8 * 1024 * 1024
_VMEM_LIMIT_BYTES = 40 * 1024 * 1024


def _make_gaussian_proj_kernel(ws, wc, wr, n_pow):
    ws = float(ws)
    wr = float(wr)
    n_pow = float(n_pow)
    inv_two_c2 = 1.0 / (2.0 * float(wc) * float(wc))

    def kernel(x_ref, o_ref):
        # Compute in f32 regardless of I/O dtype; the in-kernel cast is a free
        # VALU op under the DMA-bound loop.
        x = x_ref[...].astype(jnp.float32)
        d = x - ws
        d2 = d * d
        # cost = 1 - n_pow * exp(-(x - ws)^2 / (2 c^2)) + wr * (x - ws)^4
        cost = 1.0 - n_pow * jnp.exp(-d2 * inv_two_c2) + wr * (d2 * d2)
        o_ref[...] = cost.astype(o_ref.dtype)

    return kernel


def gaussian_projection(cost_value, gaussian_params=GAUSSIAN_PARAMS):
    """Forward pass of GaussianProjection, matching the PyTorch semantics."""
    ws = gaussian_params["s"]
    wc = gaussian_params["c"]
    wr = gaussian_params["r"]
    n_int = gaussian_params["n"]
    assert float(n_int) == int(n_int), "gaussian_params['n'] must be an integer"
    n_pow = math.pow(-1.0, n_int)

    if wc == 0.0:
        # Same early-return as the PyTorch module.
        return cost_value

    orig_shape = cost_value.shape
    in_dtype = cost_value.dtype
    # torch type promotion: float tensors keep their dtype; int/bool tensors
    # promote to float (the expression mixes python floats).
    out_dtype = in_dtype if jnp.issubdtype(in_dtype, jnp.floating) else jnp.float32

    n = int(cost_value.size)
    if n == 0:
        return jnp.zeros(orig_shape, out_dtype)

    kernel = _make_gaussian_proj_kernel(ws, wc, wr, n_pow)

    in_item = jnp.dtype(in_dtype).itemsize
    out_item = jnp.dtype(out_dtype).itemsize
    itemsize = max(in_item, out_item)

    cost_estimate = pl.CostEstimate(
        flops=8 * n,
        transcendentals=n,
        bytes_accessed=n * (in_item + out_item),
    )
    compiler_params = pltpu.CompilerParams(
        dimension_semantics=("parallel",),
        vmem_limit_bytes=_VMEM_LIMIT_BYTES,
    )

    flat = cost_value.reshape(-1)  # metadata-only reshape (contiguous)

    if n % _LANE == 0:
        # Common path: lane-dense (rows, 128) slab, row-tiled blocks.
        rows = n // _LANE
        rows_per_block = max(
            _SUBLANE,
            (_TARGET_BLOCK_BYTES // (_LANE * itemsize)) // _SUBLANE * _SUBLANE,
        )
        tr = rows if rows <= rows_per_block else rows_per_block
        grid = (pl.cdiv(rows, tr),)
        x2d = flat.reshape(rows, _LANE)
        out = pl.pallas_call(
            kernel,
            out_shape=jax.ShapeDtypeStruct((rows, _LANE), out_dtype),
            grid_spec=pltpu.PrefetchScalarGridSpec(
                num_scalar_prefetch=0,
                grid=grid,
                in_specs=[pl.BlockSpec((tr, _LANE), lambda i: (i, 0))],
                out_specs=pl.BlockSpec((tr, _LANE), lambda i: (i, 0)),
            ),
            compiler_params=compiler_params,
            cost_estimate=cost_estimate,
        )(x2d)
        return out.reshape(orig_shape)

    # Odd numel: run on the flat 1D view directly (no jnp.pad / out[:n] HBM
    # round trips); Pallas clips/masks the partial edge block.
    elems_per_block = max(
        _SUBLANE * _LANE,
        (_TARGET_BLOCK_BYTES // itemsize)
        // (_SUBLANE * _LANE) * (_SUBLANE * _LANE),
    )
    te = n if n <= elems_per_block else elems_per_block
    grid = (pl.cdiv(n, te),)
    out = pl.pallas_call(
        kernel,
        out_shape=jax.ShapeDtypeStruct((n,), out_dtype),
        grid_spec=pltpu.PrefetchScalarGridSpec(
            num_scalar_prefetch=0,
            grid=grid,
            in_specs=[pl.BlockSpec((te,), lambda i: (i,))],
            out_specs=pl.BlockSpec((te,), lambda i: (i,)),
        ),
        compiler_params=compiler_params,
        cost_estimate=cost_estimate,
    )(flat)
    return out.reshape(orig_shape)


def _reference(cost_value, gaussian_params=GAUSSIAN_PARAMS):
    ws = gaussian_params["s"]
    wc = gaussian_params["c"]
    wr = gaussian_params["r"]
    n_pow = math.pow(-1.0, gaussian_params["n"])
    if wc == 0.0:
        return cost_value
    x = cost_value.astype(jnp.float32)
    exp_term = -1.0 * (x - ws) ** 2 / (2.0 * wc ** 2)
    out = 1.0 - n_pow * jnp.exp(exp_term) + wr * (x - ws) ** 4
    out_dtype = (cost_value.dtype
                 if jnp.issubdtype(cost_value.dtype, jnp.floating) else jnp.float32)
    return out.astype(out_dtype)


if __name__ == "__main__":
    key = jax.random.PRNGKey(0)
    # e.g. cost values over (batch, channels, spatial, spatial) rollouts
    x = jax.random.uniform(key, (2, 4, 16, 16), dtype=jnp.float32)

    out = jax.block_until_ready(gaussian_projection(x))
    ref = _reference(x)
    assert out.shape == x.shape and out.dtype == x.dtype
    assert jnp.allclose(out, ref, atol=1e-5, rtol=1e-5)

    # Odd-numel path (flat 1D kernel, no pad/slice round trips).
    x_odd = jax.random.uniform(jax.random.PRNGKey(1), (3, 7, 11), dtype=jnp.float32)
    out_odd = jax.block_until_ready(gaussian_projection(x_odd))
    assert out_odd.shape == x_odd.shape
    assert jnp.allclose(out_odd, _reference(x_odd), atol=1e-5, rtol=1e-5)

    # bf16 I/O path (bf16 stays in HBM, f32 math in-kernel).
    x_bf16 = x.astype(jnp.bfloat16)
    out_bf16 = jax.block_until_ready(gaussian_projection(x_bf16))
    assert out_bf16.dtype == jnp.bfloat16
    assert jnp.allclose(out_bf16.astype(jnp.float32),
                        _reference(x_bf16).astype(jnp.float32),
                        atol=2e-2, rtol=2e-2)

    # Integer input: passed through untouched to the kernel, cast in-kernel,
    # f32 result (matches torch type promotion).
    x_int = (jnp.arange(2 * 128, dtype=jnp.int32).reshape(2, 128)) % 5
    out_int = jax.block_until_ready(gaussian_projection(x_int))
    assert out_int.dtype == jnp.float32
    assert jnp.allclose(out_int, _reference(x_int), atol=1e-5, rtol=1e-5)

    # wc == 0 early-return path (no kernel needed there).
    out_id = gaussian_projection(x, {"n": 0, "c": 0.0, "s": 0.0, "r": 0.0})
    assert jnp.allclose(out_id, x)

    print("KERNEL_OK")
</pallas_src>

<mosaic_0001>
module attributes {stable_mosaic.version = 11 : i64} {
  func.func @kernel(%arg0: i32, %arg1: memref<16x128xf32, #tpu.memory_space<vmem>>, %arg2: memref<16x128xf32, #tpu.memory_space<vmem>>) attributes {dimension_semantics = [#tpu.dimension_semantics<parallel>], iteration_bounds = array<i64: 1>, scalar_prefetch = 0 : i64, scratch_operands = 0 : i64, tpu.core_type = #tpu.core_type<tc>, window_params = [{transform_indices = @transform_0, window_bounds = array<i64: 16, 128>}, {transform_indices = @transform_1, window_bounds = array<i64: 16, 128>}]} {
    %c0 = arith.constant 0 : index
    %c0_0 = arith.constant 0 : index
    %0 = vector.load %arg1[%c0, %c0_0] : memref<16x128xf32, #tpu.memory_space<vmem>>, vector<16x128xf32>
    %cst = arith.constant 5.000000e-02 : f32
    %1 = vector.broadcast %cst : f32 to vector<16x128xf32>
    %2 = arith.subf %0, %1 : vector<16x128xf32>
    %3 = arith.mulf %2, %2 : vector<16x128xf32>
    %cst_1 = arith.constant 0.000000e+00 : f32
    %4 = vector.broadcast %cst_1 : f32 to vector<16x128xf32>
    %5 = arith.subf %4, %3 : vector<16x128xf32>
    %cst_2 = arith.constant 1.250000e+01 : f32
    %6 = vector.broadcast %cst_2 : f32 to vector<16x128xf32>
    %7 = arith.mulf %5, %6 : vector<16x128xf32>
    %8 = math.exp %7 : vector<16x128xf32>
    %cst_3 = arith.constant 1.000000e+00 : f32
    %9 = vector.broadcast %cst_3 : f32 to vector<16x128xf32>
    %10 = arith.mulf %9, %8 : vector<16x128xf32>
    %cst_4 = arith.constant 1.000000e+00 : f32
    %11 = vector.broadcast %cst_4 : f32 to vector<16x128xf32>
    %12 = arith.subf %11, %10 : vector<16x128xf32>
    %13 = arith.mulf %3, %3 : vector<16x128xf32>
    %cst_5 = arith.constant 1.000000e-01 : f32
    %14 = vector.broadcast %cst_5 : f32 to vector<16x128xf32>
    %15 = arith.mulf %14, %13 : vector<16x128xf32>
    %16 = arith.addf %12, %15 : vector<16x128xf32>
    %c0_6 = arith.constant 0 : index
    %c0_7 = arith.constant 0 : index
    %17 = vector.load %arg2[%c0_6, %c0_7] : memref<16x128xf32, #tpu.memory_space<vmem>>, vector<16x128xf32>
    tpu.vector_store %arg2[%c0_6, %c0_7], %16 {strides = array<i32>} : memref<16x128xf32, #tpu.memory_space<vmem>>, vector<16x128xf32>,
    return
  }
  func.func @transform_0(%arg0: i32) -> (i32, i32) {
    %c0_i32 = arith.constant 0 : i32
    %c0_i32_0 = arith.constant 0 : i32
    return %arg0, %c0_i32 : i32, i32
  }
  func.func @transform_1(%arg0: i32) -> (i32, i32) {
    %c0_i32 = arith.constant 0 : i32
    %c0_i32_0 = arith.constant 0 : i32
    return %arg0, %c0_i32 : i32, i32
  }
}

</mosaic_0001>

<llo_original>
// kernel: tpu_custom_call.1
$region0: #{tpu_custom_call.1}
  #allocation0 [shape = 'u32[]', space=smem, size = 0x4, offset = 0x4, fixed_abs, tag = 'smem constant byte address 0x4 - core index']
  #allocation1 [shape = 'u32[144,128]{1,0:T(1,128)}', space=vmem, size = 0x12000, scoped, tag = 'internal scratch']
  %s0 = inlined_call_operand.hbm [shape: f32[16,128], index: 0, kind: input, shape index: {}]
  %s1 = inlined_call_operand.hbm [shape: f32[16,128], index: 1, kind: output, shape index: {}]
  %s2 = sld [smem:[#allocation0]]
  $region18: #{tpu_custom_call.1} parent=0
    _
  %s4 = ssub.s32 1, %s2
  %s5 = scalar_select 0, %s4, %s2
  $region1: #{tpu_custom_call.1} parent=0
    #allocation2 [shape = 'u8[8192]{0}', space=vmem, size = 0x2000, scoped, tag = 'input window, operand 0, single buffered']
    #allocation3 [shape = 's32[1]{0}', space=sflag, size = 0x4, scoped, tag = 'scoped memory for tpu_custom_call.1']
    #allocation4 [shape = 's32[1]{0}', space=sflag, size = 0x4, scoped, tag = 'scoped memory for tpu_custom_call.1']
    #allocation5 [shape = 'u8[8192]{0}', space=vmem, size = 0x2000, scoped, tag = 'output window, operand 0, single buffered']
    %6 = vsyncpa [#allocation3], 0
    %7 = vsyncpa [#allocation4], 0
    // Predicated region
    $region2: #{tpu_custom_call.1} parent=1 // pred_check
      _
    $region3: #{tpu_custom_call.1} parent=1 // pred_check_branch
      %9 = sbr.rel (0) target = $region5
    $region4: #{tpu_custom_call.1} parent=1 // pred_region
      %s11 = ssub.s32 256, 256
      %12 = vsyncadd [#allocation3], %s11
      %s13 = sshll.u32 [#allocation2], 4
      %s14 = int_to_ptr.vmem [resolvable:$true] %s13
      %19 = dma.hbm_to_vmem [thread:$0]  %s0, 256, %s14, [#allocation3], 128, 128, 8
    $region5: #{tpu_custom_call.1} parent=1 // pred_fallthru
      _
    // Predicated region
    $region6: #{tpu_custom_call.1} parent=1 // pred_check
      _
    $region7: #{tpu_custom_call.1} parent=1 // pred_check_branch
      %21 = sbr.rel (0) target = $region9
    $region8: #{tpu_custom_call.1} parent=1 // pred_region
      %22 = dma.done [#allocation3], 256
    $region9: #{tpu_custom_call.1} parent=1 // pred_fallthru
      _
    %v23 = vld [vmem:[#allocation2] sm:$0xff]
    %v24 = vld [vmem:[#allocation2 + $0x8] sm:$0xff]
    %v25 = vsub.f32 %v23, 0.05
    %v26 = vsub.f32 %v24, 0.05
    %v27 = vmul.f32 %v25, %v25
    %v28 = vmul.f32 %v26, %v26
    %v29 = vsub.f32 0.0, %v27
    %v30 = vsub.f32 0.0, %v28
    %v31 = vmul.f32 %v29, 12.5
    %v32 = vmul.f32 %v30, 12.5
    %v33 = vmul.f32 %v31, 1.442695
    %v34 = vpow.pop %v33
    %v35 = vmul.f32 %v32, 1.442695
    %v36 = vpow.pop %v35
    %v37 = vsub.f32 1.0, %v34
    %v38 = vsub.f32 1.0, %v36
    %v39 = vmul.f32 %v27, %v27
    %v40 = vmul.f32 %v28, %v28
    %v41 = vmul.f32 %v39, 0.1
    %v42 = vmul.f32 %v40, 0.1
    %v43 = vadd.f32 %v37, %v41
    %v44 = vadd.f32 %v38, %v42
    %45 = vst [vmem:[#allocation5] sm:$0xff] %v43
    %46 = vst [vmem:[#allocation5 + $0x8] sm:$0xff] %v44
    // Predicated region
    $region10: #{tpu_custom_call.1} parent=1 // pred_check
      _
    $region11: #{tpu_custom_call.1} parent=1 // pred_check_branch
      %48 = sbr.rel (0) target = $region13
    $region12: #{tpu_custom_call.1} parent=1 // pred_region
      %s50 = ssub.s32 256, 256
      %51 = vsyncadd [#allocation4], %s50
      %s52 = sshll.u32 [#allocation5], 4
      %s53 = int_to_ptr.vmem [resolvable:$true] %s52
      %58 = dma.vmem_to_hbm [thread:$0]  %s53, 256, %s1, [#allocation4], 128, 128, 8
    $region13: #{tpu_custom_call.1} parent=1 // pred_fallthru
      _
    // Predicated region
    $region14: #{tpu_custom_call.1} parent=1 // pred_check
      _
    $region15: #{tpu_custom_call.1} parent=1 // pred_check_branch
      %60 = sbr.rel (0) target = $region17
    $region16: #{tpu_custom_call.1} parent=1 // pred_region
      %61 = dma.done [#allocation4], 256
    $region17: #{tpu_custom_call.1} parent=1 // pred_fallthru
      _
    %62 = vsyncpa [#allocation3], 1
    %63 = vsyncpa [#allocation4], 1

</llo_original>
